<compile_context>
chip_gen: v7x
topology: tpu7x:2x2x1
jax: 0.10.0
libtpu: 0.0.40
codegen_flags: <defaults>
</compile_context>

<pallas_src>
import jax
import jax.numpy as jnp
from jax.experimental import pallas as pl
from jax.experimental.pallas import tpu as pltpu


_SUBLANE = 8
_LANE = 128
# Anything smaller than one vreg worth of data goes through plain XLA.
_MIN_PALLAS_ELEMS = _SUBLANE * _LANE  # 1024

# Target ~0.5M elements per tile: 2 MiB for f32 (8 MiB resident with
# double-buffered input + output), safe on every TPU generation's default
# scoped-VMEM limit (v5e 16 MiB / v6e 32 MiB / v7x 32 MiB scoped, 64 MiB phys)
# while still amortizing the ~0.35 us per-grid-step overhead.
_TARGET_TILE_ELEMS = 512 * 1024


def _add_one_kernel(x_ref, o_ref):
    # Pure elementwise VPU add on the whole (block_rows, cols) VMEM tile.
    o_ref[...] = x_ref[...] + jnp.asarray(1, dtype=o_ref.dtype)


def _choose_slab(n):
    """Pick (padded_n, lane_cols) so padded_n == rows * lane_cols with
    rows a multiple of 8 and lane_cols a multiple of 128 (lane-dense)."""
    for cols in (1024, 512, 256, 128):
        if n % (_SUBLANE * cols) == 0:
            return n, cols  # no padding needed
    padded = pl.cdiv(n, _SUBLANE * _LANE) * (_SUBLANE * _LANE)
    return padded, _LANE


def guchi_forward(x):
    """Pallas equivalent of Guchi.forward: returns x + 1 (same shape/dtype)."""
    x = jnp.asarray(x)
    orig_shape = x.shape
    n = x.size

    # Reference usage is a 0-d scalar: XLA's fused add is strictly faster for
    # sub-vreg sizes, so skip the Pallas launch entirely.
    if n < _MIN_PALLAS_ELEMS:
        return x + jnp.asarray(1, dtype=x.dtype)

    padded_n, cols = _choose_slab(n)
    flat = x.reshape(-1)
    if padded_n != n:
        flat = jnp.pad(flat, (0, padded_n - n))
    rows = padded_n // cols
    x2d = flat.reshape(rows, cols)

    # Largest row-tile (multiple of 8) keeping ~_TARGET_TILE_ELEMS per block.
    block_rows = max(_SUBLANE,
                     (_TARGET_TILE_ELEMS // cols) // _SUBLANE * _SUBLANE)
    block_rows = min(block_rows, rows)  # rows is a multiple of 8

    out2d = pl.pallas_call(
        _add_one_kernel,
        out_shape=jax.ShapeDtypeStruct((rows, cols), x2d.dtype),
        grid_spec=pl.GridSpec(
            # Ragged last block (if rows % block_rows != 0) is handled by
            # Pallas: padded reads, masked writeback.
            grid=(pl.cdiv(rows, block_rows),),
            in_specs=[pl.BlockSpec((block_rows, cols), lambda i: (i, 0))],
            out_specs=pl.BlockSpec((block_rows, cols), lambda i: (i, 0)),
        ),
        compiler_params=pltpu.CompilerParams(
            dimension_semantics=("parallel",),
        ),
    )(x2d)

    out_flat = out2d.reshape(-1)
    if padded_n != n:
        out_flat = out_flat[:n]
    return out_flat.reshape(orig_shape)


if __name__ == "__main__":
    key = jax.random.PRNGKey(0)
    k1, k2, k3, k4 = jax.random.split(key, 4)

    # Reference-usage input: 0-d scalar with value 1.0 (short-circuit path).
    scalar_in = jnp.array(1.0, dtype=jnp.float32)
    scalar_out = jax.block_until_ready(guchi_forward(scalar_in))
    assert scalar_out.shape == ()
    assert jnp.allclose(scalar_out, jnp.array(2.0, dtype=jnp.float32))

    # One vreg-aligned slab (Pallas path, single block).
    x1 = jax.random.normal(k1, (8, 128), dtype=jnp.float32)
    y1 = jax.block_until_ready(guchi_forward(x1))
    assert y1.shape == x1.shape and jnp.allclose(y1, x1 + 1.0)

    # Small batched 4-D input, flattened to a lane-dense (8, 256) slab.
    x2 = jax.random.normal(k2, (2, 4, 16, 16), dtype=jnp.float32)
    y2 = jax.block_until_ready(guchi_forward(x2))
    assert y2.shape == x2.shape and jnp.allclose(y2, x2 + 1.0)

    # Ragged size that exercises tail padding + unpadding.
    x3 = jax.random.normal(k3, (5, 300), dtype=jnp.float32)
    y3 = jax.block_until_ready(guchi_forward(x3))
    assert y3.shape == x3.shape and jnp.allclose(y3, x3 + 1.0)

    # Larger slab exercising the tiled, pipelined multi-block grid (grid=4).
    x4 = jax.random.normal(k4, (2048, 1024), dtype=jnp.float32)
    y4 = jax.block_until_ready(guchi_forward(x4))
    assert y4.shape == x4.shape and jnp.allclose(y4, x4 + 1.0)

    print("KERNEL_OK")
</pallas_src>

<mosaic_0001>
module attributes {stable_mosaic.version = 11 : i64} {
  func.func @_add_one_kernel(%arg0: i32, %arg1: memref<8x128xf32, #tpu.memory_space<vmem>>, %arg2: memref<8x128xf32, #tpu.memory_space<vmem>>) attributes {dimension_semantics = [#tpu.dimension_semantics<parallel>], iteration_bounds = array<i64: 1>, scalar_prefetch = 0 : i64, scratch_operands = 0 : i64, tpu.core_type = #tpu.core_type<tc>, window_params = [{transform_indices = @transform_0, window_bounds = array<i64: 8, 128>}, {transform_indices = @transform_1, window_bounds = array<i64: 8, 128>}]} {
    %c0 = arith.constant 0 : index
    %c0_0 = arith.constant 0 : index
    %0 = vector.load %arg1[%c0, %c0_0] : memref<8x128xf32, #tpu.memory_space<vmem>>, vector<8x128xf32>
    %cst = arith.constant 1.000000e+00 : f32
    %1 = vector.broadcast %cst : f32 to vector<8x128xf32>
    %2 = arith.addf %0, %1 : vector<8x128xf32>
    %c0_1 = arith.constant 0 : index
    %c0_2 = arith.constant 0 : index
    %3 = vector.load %arg2[%c0_1, %c0_2] : memref<8x128xf32, #tpu.memory_space<vmem>>, vector<8x128xf32>
    tpu.vector_store %arg2[%c0_1, %c0_2], %2 {strides = array<i32>} : memref<8x128xf32, #tpu.memory_space<vmem>>, vector<8x128xf32>,
    return
  }
  func.func @transform_0(%arg0: i32) -> (i32, i32) {
    %c0_i32 = arith.constant 0 : i32
    %c0_i32_0 = arith.constant 0 : i32
    return %arg0, %c0_i32 : i32, i32
  }
  func.func @transform_1(%arg0: i32) -> (i32, i32) {
    %c0_i32 = arith.constant 0 : i32
    %c0_i32_0 = arith.constant 0 : i32
    return %arg0, %c0_i32 : i32, i32
  }
}

</mosaic_0001>

<llo_original>
// kernel: tpu_custom_call.1
$region0: #{tpu_custom_call.1}
  #allocation0 [shape = 'u32[]', space=smem, size = 0x4, offset = 0x4, fixed_abs, tag = 'smem constant byte address 0x4 - core index']
  #allocation1 [shape = 'u32[144,128]{1,0:T(1,128)}', space=vmem, size = 0x12000, scoped, tag = 'internal scratch']
  %s0 = inlined_call_operand.hbm [shape: f32[8,128], index: 0, kind: input, shape index: {}]
  %s1 = inlined_call_operand.hbm [shape: f32[8,128], index: 1, kind: output, shape index: {}]
  %s2 = sld [smem:[#allocation0]]
  $region18: #{tpu_custom_call.1} parent=0
    _
  %s4 = ssub.s32 1, %s2
  %s5 = scalar_select 0, %s4, %s2
  $region1: #{tpu_custom_call.1} parent=0
    #allocation2 [shape = 'u8[4096]{0}', space=vmem, size = 0x1000, scoped, tag = 'input window, operand 0, single buffered']
    #allocation3 [shape = 's32[1]{0}', space=sflag, size = 0x4, scoped, tag = 'scoped memory for tpu_custom_call.1']
    #allocation4 [shape = 's32[1]{0}', space=sflag, size = 0x4, scoped, tag = 'scoped memory for tpu_custom_call.1']
    #allocation5 [shape = 'u8[4096]{0}', space=vmem, size = 0x1000, scoped, tag = 'output window, operand 0, single buffered']
    %6 = vsyncpa [#allocation3], 0
    %7 = vsyncpa [#allocation4], 0
    // Predicated region
    $region2: #{tpu_custom_call.1} parent=1 // pred_check
      _
    $region3: #{tpu_custom_call.1} parent=1 // pred_check_branch
      %9 = sbr.rel (0) target = $region5
    $region4: #{tpu_custom_call.1} parent=1 // pred_region
      %s11 = ssub.s32 128, 128
      %12 = vsyncadd [#allocation3], %s11
      %s14 = sshll.u32 [#allocation2], 4
      %s15 = int_to_ptr.vmem [resolvable:$true] %s14
      %17 = dma.hbm_to_vmem [thread:$0]  %s0, 128, %s15, [#allocation3]
    $region5: #{tpu_custom_call.1} parent=1 // pred_fallthru
      _
    // Predicated region
    $region6: #{tpu_custom_call.1} parent=1 // pred_check
      _
    $region7: #{tpu_custom_call.1} parent=1 // pred_check_branch
      %19 = sbr.rel (0) target = $region9
    $region8: #{tpu_custom_call.1} parent=1 // pred_region
      %20 = dma.done [#allocation3], 128
    $region9: #{tpu_custom_call.1} parent=1 // pred_fallthru
      _
    %v21 = vld [vmem:[#allocation2] sm:$0xff]
    %v22 = vadd.f32 %v21, 1.0
    %23 = vst [vmem:[#allocation5] sm:$0xff] %v22
    // Predicated region
    $region10: #{tpu_custom_call.1} parent=1 // pred_check
      _
    $region11: #{tpu_custom_call.1} parent=1 // pred_check_branch
      %25 = sbr.rel (0) target = $region13
    $region12: #{tpu_custom_call.1} parent=1 // pred_region
      %s27 = ssub.s32 128, 128
      %28 = vsyncadd [#allocation4], %s27
      %s30 = sshll.u32 [#allocation5], 4
      %s31 = int_to_ptr.vmem [resolvable:$true] %s30
      %33 = dma.vmem_to_hbm [thread:$0]  %s31, 128, %s1, [#allocation4]
    $region13: #{tpu_custom_call.1} parent=1 // pred_fallthru
      _
    // Predicated region
    $region14: #{tpu_custom_call.1} parent=1 // pred_check
      _
    $region15: #{tpu_custom_call.1} parent=1 // pred_check_branch
      %35 = sbr.rel (0) target = $region17
    $region16: #{tpu_custom_call.1} parent=1 // pred_region
      %36 = dma.done [#allocation4], 128
    $region17: #{tpu_custom_call.1} parent=1 // pred_fallthru
      _
    %37 = vsyncpa [#allocation3], 1
    %38 = vsyncpa [#allocation4], 1

</llo_original>
